<compile_context>
chip_gen: v7x
topology: tpu7x:2x2x1
jax: 0.10.0
libtpu: 0.0.40
codegen_flags: <defaults>
</compile_context>

<pallas_src>
import functools

import jax
import jax.numpy as jnp
from jax import lax
from jax.experimental import pallas as pl
from jax.experimental.pallas import tpu as pltpu


def _round_up(x, m):
    return (x + m - 1) // m * m


# ----------------------------------------------------------------------------
# Pallas kernel: (Linear->ReLU) x3 -> Linear -> Sigmoid, gridded over batch.
# Refs: x_dense, x_emb, W1d, W1e, b1, W2, b2, W3, b3, w4, b4, out
# ----------------------------------------------------------------------------
def _mlp_kernel(xd_ref, xe_ref, w1d_ref, w1e_ref, b1_ref,
                w2_ref, b2_ref, w3_ref, b3_ref, w4_ref, b4_ref, o_ref):
    # ---- Layer 1: two bf16 MXU dots (split-K over [dense | embeddings]),
    # f32 accumulation.  Equivalent to concat-then-matmul. ----
    acc = jnp.dot(xd_ref[...], w1d_ref[...],
                  preferred_element_type=jnp.float32)
    acc = acc + jnp.dot(xe_ref[...], w1e_ref[...],
                        preferred_element_type=jnp.float32)
    h1 = jnp.maximum(acc + b1_ref[...], 0.0)        # bias/ReLU in f32
    # ActivationDropout(p) -> identity at inference.

    # ---- Layer 2: bf16 MXU matmul, f32 accumulation / elementwise. ----
    h2 = jnp.dot(h1.astype(jnp.bfloat16), w2_ref[...],
                 preferred_element_type=jnp.float32) + b2_ref[...]
    h2 = jnp.maximum(h2, 0.0)

    # ---- Layer 3. ----
    h3 = jnp.dot(h2.astype(jnp.bfloat16), w3_ref[...],
                 preferred_element_type=jnp.float32) + b3_ref[...]
    h3 = jnp.maximum(h3, 0.0)

    # ---- Layer 4: single MXU pass producing a lane-dense [1, TILE_B] row:
    # w4[1,14] . h3[TILE_B,14]^T  (contract both operands on their last dim,
    # same dimension numbers as the standard q.k^T attention dot). ----
    logits = lax.dot_general(
        w4_ref[...], h3.astype(jnp.bfloat16),
        dimension_numbers=(((1,), (1,)), ((), ())),
        preferred_element_type=jnp.float32) + b4_ref[...]
    o_ref[...] = jax.nn.sigmoid(logits).astype(o_ref.dtype)


def strokenet_mlp(x_dense, x_emb, mlp_params, *, tile_b=2048):
    """Run the StrokeNet MLP on pre-grouped bf16 features.

    x_dense: [B, num_numeric + num_binary] bf16
    x_emb  : [B, n_cat * embed_dim]        bf16
    Returns [B, 1] f32 probabilities.
    """
    B = x_dense.shape[0]
    (w1d, w1e, b1, w2, b2, w3, b3, w4, b4) = mlp_params

    # Lane-aligned batch tiles (multiple of 128): big tiles amortize the
    # ~0.35us/grid-step overhead; keep >= 2 grid steps when the batch is big
    # enough so v7x's two TensorCores both get work.
    tile_b = max(128, min(_round_up(tile_b, 128), _round_up(B, 128)))
    if pl.cdiv(B, tile_b) < 2 and B >= 256:
        tile_b = _round_up(pl.cdiv(B, 2), 128)
    num_tiles = pl.cdiv(B, tile_b)   # partial last block handled by Pallas

    weights = [w1d, w1e, b1, w2, b2, w3, b3, w4, b4]

    # Activation tiles stream over the batch grid; weights/biases use a
    # constant index_map so they stay VMEM-resident across iterations.
    act_specs = [
        pl.BlockSpec((tile_b, x_dense.shape[1]), lambda i: (i, 0)),
        pl.BlockSpec((tile_b, x_emb.shape[1]), lambda i: (i, 0)),
    ]
    res_specs = [pl.BlockSpec(w.shape, lambda i: (0, 0)) for w in weights]

    out = pl.pallas_call(
        _mlp_kernel,
        out_shape=jax.ShapeDtypeStruct((1, B), jnp.float32),
        grid_spec=pltpu.PrefetchScalarGridSpec(
            num_scalar_prefetch=0,
            grid=(num_tiles,),
            in_specs=act_specs + res_specs,
            out_specs=pl.BlockSpec((1, tile_b), lambda i: (0, i)),
        ),
        compiler_params=pltpu.CompilerParams(
            dimension_semantics=("parallel",),
            # Explicit budget: ~10 MiB used at TILE_B=2048 incl. double
            # buffering; 32 MiB leaves headroom on v5e/v6e and fits v7x's
            # 64 MiB physical VMEM.
            vmem_limit_bytes=32 * 1024 * 1024,
        ),
    )(x_dense, x_emb, *weights)

    return out.reshape(B, 1)


# ----------------------------------------------------------------------------
# Parameters + forward (embedding gather stays in plain JAX as glue)
# ----------------------------------------------------------------------------
def init_strokenet_params(key, num_numeric, num_binary, cat_cardinalities,
                          embed_dim):
    """Deterministic synthetic init matching the PyTorch module's shapes."""
    cards = list(cat_cardinalities.values())
    n_cat = len(cards)
    input_dim = num_numeric + num_binary + embed_dim * n_cat
    keys = jax.random.split(key, n_cat + 8)

    # Single stacked embedding table (bf16) + per-column row offsets, so the
    # forward pass needs only one gather for all categorical features.
    tables = [
        jax.random.normal(keys[i], (c, embed_dim), dtype=jnp.float32) * 0.1
        for i, c in enumerate(cards)
    ]
    emb_table = jnp.concatenate(tables, axis=0).astype(jnp.bfloat16)
    offs, running = [], 0
    for c in cards:
        offs.append(running)
        running += c
    emb_offsets = jnp.asarray(offs, dtype=jnp.int32)

    def linear(kw, kb, fan_in, fan_out):
        w = jax.random.normal(kw, (fan_in, fan_out), dtype=jnp.float32) / jnp.sqrt(fan_in)
        b = jax.random.normal(kb, (1, fan_out), dtype=jnp.float32) * 0.01
        return w, b

    w1, b1 = linear(keys[n_cat + 0], keys[n_cat + 1], input_dim, 64)
    w2, b2 = linear(keys[n_cat + 2], keys[n_cat + 3], 64, 40)
    w3, b3 = linear(keys[n_cat + 4], keys[n_cat + 5], 40, 14)
    w4, b4 = linear(keys[n_cat + 6], keys[n_cat + 7], 14, 1)

    # Split W1 row-wise to match the torch.cat([x_num, x_bin, *emb]) column
    # order; all MXU weights stored in bf16, biases in f32.
    d = num_numeric + num_binary
    mlp_params = (
        w1[:d].astype(jnp.bfloat16),      # [d, 64]   rows for [x_num | x_bin]
        w1[d:].astype(jnp.bfloat16),      # [24, 64]  rows for stacked embeddings
        b1,                               # [1, 64]   f32
        w2.astype(jnp.bfloat16), b2,      # [64, 40] bf16, [1, 40] f32
        w3.astype(jnp.bfloat16), b3,      # [40, 14] bf16, [1, 14] f32
        w4.T.astype(jnp.bfloat16),        # [1, 14]  bf16 row
        b4,                               # [1, 1]   f32
    )
    return (emb_table, emb_offsets, mlp_params), input_dim


@functools.partial(jax.jit, static_argnames=("tile_b",))
def strokenet_forward(x_num, x_bin, x_cat, params, tile_b=2048):
    """Forward pass:
       x_num : [B, num_numeric] f32
       x_bin : [B, num_binary]  f32
       x_cat : [B, n_cat]       int32
       returns [B, 1] f32 sigmoid probabilities.
    """
    emb_table, emb_offsets, mlp_params = params
    B = x_num.shape[0]
    # Dense features: one [B, 9] bf16 array (torch.cat of x_num, x_bin).
    x_dense = jnp.concatenate([x_num, x_bin], axis=1).astype(jnp.bfloat16)
    # Categorical features: one gather over the stacked table -> [B, 24] bf16
    # (column order matches torch.cat([emb_0, emb_1, emb_2])).
    flat_idx = (x_cat + emb_offsets[None, :]).reshape(-1)
    x_emb = jnp.take(emb_table, flat_idx, axis=0).reshape(B, -1)
    return strokenet_mlp(x_dense, x_emb, mlp_params, tile_b=tile_b)


def strokenet_reference(x_num, x_bin, x_cat, params):
    """Plain-JAX reference mirroring the kernel's math (for validation)."""
    emb_table, emb_offsets, mlp_params = params
    w1d, w1e, b1, w2, b2, w3, b3, w4, b4 = mlp_params
    B = x_num.shape[0]
    x_dense = jnp.concatenate([x_num, x_bin], axis=1).astype(jnp.bfloat16)
    flat_idx = (x_cat + emb_offsets[None, :]).reshape(-1)
    x_emb = jnp.take(emb_table, flat_idx, axis=0).reshape(B, -1)

    h1 = jnp.maximum(
        jnp.dot(x_dense, w1d, preferred_element_type=jnp.float32)
        + jnp.dot(x_emb, w1e, preferred_element_type=jnp.float32) + b1, 0.0)
    h2 = jnp.maximum(
        jnp.dot(h1.astype(jnp.bfloat16), w2,
                preferred_element_type=jnp.float32) + b2, 0.0)
    h3 = jnp.maximum(
        jnp.dot(h2.astype(jnp.bfloat16), w3,
                preferred_element_type=jnp.float32) + b3, 0.0)
    logits = jnp.dot(h3.astype(jnp.bfloat16), w4.T,
                     preferred_element_type=jnp.float32) + b4
    return jax.nn.sigmoid(logits)


# ----------------------------------------------------------------------------
# main
# ----------------------------------------------------------------------------
if __name__ == "__main__":
    # Small demo shapes.  tile_b=128 (lane-aligned) so the demo exercises a
    # multi-step grid plus a partial (masked) last block; production batches
    # should use the default tile_b=2048.
    batch = 200
    tile_b = 128
    num_numeric = 6
    num_binary = 3
    cat_cardinalities = {"work_type": 5, "smoking_status": 4, "residence": 2}
    embed_dim = 8
    dropout_p = 0.3  # identity at inference; kept for interface parity.

    key = jax.random.PRNGKey(0)
    k_params, k_num, k_bin, k_cat = jax.random.split(key, 4)

    params, input_dim = init_strokenet_params(
        k_params, num_numeric, num_binary, cat_cardinalities, embed_dim)

    x_num = jax.random.normal(k_num, (batch, num_numeric), dtype=jnp.float32)
    x_bin = jax.random.bernoulli(
        k_bin, 0.5, (batch, num_binary)).astype(jnp.float32)
    cards = jnp.asarray(list(cat_cardinalities.values()), dtype=jnp.int32)
    x_cat = (jax.random.randint(
        k_cat, (batch, len(cat_cardinalities)), 0, 10**6) % cards).astype(
            jnp.int32)

    out = strokenet_forward(x_num, x_bin, x_cat, params, tile_b=tile_b)
    out = jax.block_until_ready(out)

    ref = strokenet_reference(x_num, x_bin, x_cat, params)

    assert out.shape == (batch, 1)
    assert bool(jnp.all(jnp.isfinite(out)))
    assert bool(jnp.all((out >= 0.0) & (out <= 1.0)))
    assert bool(jnp.allclose(out, ref, atol=5e-3, rtol=5e-3))
    print("KERNEL_OK")
</pallas_src>

<mosaic_0001>
module attributes {stable_mosaic.version = 11 : i64} {
  func.func @_mlp_kernel(%arg0: i32, %arg1: memref<128x9xbf16, #tpu.memory_space<vmem>>, %arg2: memref<128x24xbf16, #tpu.memory_space<vmem>>, %arg3: memref<9x64xbf16, #tpu.memory_space<vmem>>, %arg4: memref<24x64xbf16, #tpu.memory_space<vmem>>, %arg5: memref<1x64xf32, #tpu.memory_space<vmem>>, %arg6: memref<64x40xbf16, #tpu.memory_space<vmem>>, %arg7: memref<1x40xf32, #tpu.memory_space<vmem>>, %arg8: memref<40x14xbf16, #tpu.memory_space<vmem>>, %arg9: memref<1x14xf32, #tpu.memory_space<vmem>>, %arg10: memref<1x14xbf16, #tpu.memory_space<vmem>>, %arg11: memref<1x1xf32, #tpu.memory_space<vmem>>, %arg12: memref<1x128xf32, #tpu.memory_space<vmem>>) attributes {dimension_semantics = [#tpu.dimension_semantics<parallel>], iteration_bounds = array<i64: 2>, scalar_prefetch = 0 : i64, scratch_operands = 0 : i64, tpu.core_type = #tpu.core_type<tc>, window_params = [{transform_indices = @transform_0, window_bounds = array<i64: 128, 9>}, {transform_indices = @transform_1, window_bounds = array<i64: 128, 24>}, {pipeline_mode = #tpu.pipeline_mode<synchronous>, transform_indices = @transform_2, window_bounds = array<i64: 9, 64>}, {pipeline_mode = #tpu.pipeline_mode<synchronous>, transform_indices = @transform_3, window_bounds = array<i64: 24, 64>}, {pipeline_mode = #tpu.pipeline_mode<synchronous>, transform_indices = @transform_4, window_bounds = array<i64: 1, 64>}, {pipeline_mode = #tpu.pipeline_mode<synchronous>, transform_indices = @transform_5, window_bounds = array<i64: 64, 40>}, {pipeline_mode = #tpu.pipeline_mode<synchronous>, transform_indices = @transform_6, window_bounds = array<i64: 1, 40>}, {pipeline_mode = #tpu.pipeline_mode<synchronous>, transform_indices = @transform_7, window_bounds = array<i64: 40, 14>}, {pipeline_mode = #tpu.pipeline_mode<synchronous>, transform_indices = @transform_8, window_bounds = array<i64: 1, 14>}, {pipeline_mode = #tpu.pipeline_mode<synchronous>, transform_indices = @transform_9, window_bounds = array<i64: 1, 14>}, {pipeline_mode = #tpu.pipeline_mode<synchronous>, transform_indices = @transform_10, window_bounds = array<i64: 1, 1>}, {transform_indices = @transform_11, window_bounds = array<i64: 1, 128>}]} {
    %c0 = arith.constant 0 : index
    %c0_0 = arith.constant 0 : index
    %0 = vector.load %arg1[%c0, %c0_0] : memref<128x9xbf16, #tpu.memory_space<vmem>>, vector<128x9xbf16>
    %c0_1 = arith.constant 0 : index
    %c0_2 = arith.constant 0 : index
    %1 = vector.load %arg3[%c0_1, %c0_2] : memref<9x64xbf16, #tpu.memory_space<vmem>>, vector<9x64xbf16>
    %cst = arith.constant dense<0.000000e+00> : vector<128x64xf32>
    %2 = tpu.matmul %0, %1, %cst {dimension_numbers = #tpu.dot_dimension_numbers<[1], [0], [0], [1], [0, 0, 1, 1], [], []>} : vector<128x9xbf16>, vector<9x64xbf16>, vector<128x64xf32> -> vector<128x64xf32>
    %c0_3 = arith.constant 0 : index
    %c0_4 = arith.constant 0 : index
    %3 = vector.load %arg2[%c0_3, %c0_4] : memref<128x24xbf16, #tpu.memory_space<vmem>>, vector<128x24xbf16>
    %c0_5 = arith.constant 0 : index
    %c0_6 = arith.constant 0 : index
    %4 = vector.load %arg4[%c0_5, %c0_6] : memref<24x64xbf16, #tpu.memory_space<vmem>>, vector<24x64xbf16>
    %cst_7 = arith.constant dense<0.000000e+00> : vector<128x64xf32>
    %5 = tpu.matmul %3, %4, %cst_7 {dimension_numbers = #tpu.dot_dimension_numbers<[1], [0], [0], [1], [0, 0, 1, 1], [], []>} : vector<128x24xbf16>, vector<24x64xbf16>, vector<128x64xf32> -> vector<128x64xf32>
    %6 = arith.addf %2, %5 : vector<128x64xf32>
    %c0_8 = arith.constant 0 : index
    %c0_9 = arith.constant 0 : index
    %7 = vector.load %arg5[%c0_8, %c0_9] : memref<1x64xf32, #tpu.memory_space<vmem>>, vector<1x64xf32>
    %8 = vector.broadcast %7 : vector<1x64xf32> to vector<128x64xf32>
    %9 = arith.addf %6, %8 : vector<128x64xf32>
    %cst_10 = arith.constant 0.000000e+00 : f32
    %10 = vector.broadcast %cst_10 : f32 to vector<128x64xf32>
    %11 = arith.maximumf %9, %10 : vector<128x64xf32>
    %12 = arith.truncf %11 : vector<128x64xf32> to vector<128x64xbf16>
    %c0_11 = arith.constant 0 : index
    %c0_12 = arith.constant 0 : index
    %13 = vector.load %arg6[%c0_11, %c0_12] : memref<64x40xbf16, #tpu.memory_space<vmem>>, vector<64x40xbf16>
    %cst_13 = arith.constant dense<0.000000e+00> : vector<128x40xf32>
    %14 = tpu.matmul %12, %13, %cst_13 {dimension_numbers = #tpu.dot_dimension_numbers<[1], [0], [0], [1], [0, 0, 1, 1], [], []>} : vector<128x64xbf16>, vector<64x40xbf16>, vector<128x40xf32> -> vector<128x40xf32>
    %c0_14 = arith.constant 0 : index
    %c0_15 = arith.constant 0 : index
    %15 = vector.load %arg7[%c0_14, %c0_15] : memref<1x40xf32, #tpu.memory_space<vmem>>, vector<1x40xf32>
    %16 = vector.broadcast %15 : vector<1x40xf32> to vector<128x40xf32>
    %17 = arith.addf %14, %16 : vector<128x40xf32>
    %cst_16 = arith.constant 0.000000e+00 : f32
    %18 = vector.broadcast %cst_16 : f32 to vector<128x40xf32>
    %19 = arith.maximumf %17, %18 : vector<128x40xf32>
    %20 = arith.truncf %19 : vector<128x40xf32> to vector<128x40xbf16>
    %c0_17 = arith.constant 0 : index
    %c0_18 = arith.constant 0 : index
    %21 = vector.load %arg8[%c0_17, %c0_18] : memref<40x14xbf16, #tpu.memory_space<vmem>>, vector<40x14xbf16>
    %cst_19 = arith.constant dense<0.000000e+00> : vector<128x14xf32>
    %22 = tpu.matmul %20, %21, %cst_19 {dimension_numbers = #tpu.dot_dimension_numbers<[1], [0], [0], [1], [0, 0, 1, 1], [], []>} : vector<128x40xbf16>, vector<40x14xbf16>, vector<128x14xf32> -> vector<128x14xf32>
    %c0_20 = arith.constant 0 : index
    %c0_21 = arith.constant 0 : index
    %23 = vector.load %arg9[%c0_20, %c0_21] : memref<1x14xf32, #tpu.memory_space<vmem>>, vector<1x14xf32>
    %24 = vector.broadcast %23 : vector<1x14xf32> to vector<128x14xf32>
    %25 = arith.addf %22, %24 : vector<128x14xf32>
    %cst_22 = arith.constant 0.000000e+00 : f32
    %26 = vector.broadcast %cst_22 : f32 to vector<128x14xf32>
    %27 = arith.maximumf %25, %26 : vector<128x14xf32>
    %c0_23 = arith.constant 0 : index
    %c0_24 = arith.constant 0 : index
    %28 = vector.load %arg10[%c0_23, %c0_24] : memref<1x14xbf16, #tpu.memory_space<vmem>>, vector<1x14xbf16>
    %29 = arith.truncf %27 : vector<128x14xf32> to vector<128x14xbf16>
    %cst_25 = arith.constant dense<0.000000e+00> : vector<1x128xf32>
    %30 = tpu.matmul %28, %29, %cst_25 {dimension_numbers = #tpu.dot_dimension_numbers<[1], [1], [0], [0], [0, 0, 1, 0], [], []>} : vector<1x14xbf16>, vector<128x14xbf16>, vector<1x128xf32> -> vector<1x128xf32>
    %c0_26 = arith.constant 0 : index
    %c0_27 = arith.constant 0 : index
    %31 = vector.load %arg11[%c0_26, %c0_27] : memref<1x1xf32, #tpu.memory_space<vmem>>, vector<1x1xf32>
    %32 = vector.broadcast %31 : vector<1x1xf32> to vector<1x128xf32>
    %33 = arith.addf %30, %32 : vector<1x128xf32>
    %34 = arith.negf %33 : vector<1x128xf32>
    %35 = math.exp %34 : vector<1x128xf32>
    %cst_28 = arith.constant 1.000000e+00 : f32
    %36 = vector.broadcast %cst_28 : f32 to vector<1x128xf32>
    %37 = arith.addf %36, %35 : vector<1x128xf32>
    %38 = arith.divf %36, %37 : vector<1x128xf32>
    %c0_29 = arith.constant 0 : index
    %c0_30 = arith.constant 0 : index
    %39 = vector.load %arg12[%c0_29, %c0_30] : memref<1x128xf32, #tpu.memory_space<vmem>>, vector<1x128xf32>
    tpu.vector_store %arg12[%c0_29, %c0_30], %38 {strides = array<i32>} : memref<1x128xf32, #tpu.memory_space<vmem>>, vector<1x128xf32>,
    return
  }
  func.func @transform_0(%arg0: i32) -> (i32, i32) {
    %c0_i32 = arith.constant 0 : i32
    %c0_i32_0 = arith.constant 0 : i32
    return %arg0, %c0_i32 : i32, i32
  }
  func.func @transform_1(%arg0: i32) -> (i32, i32) {
    %c0_i32 = arith.constant 0 : i32
    %c0_i32_0 = arith.constant 0 : i32
    return %arg0, %c0_i32 : i32, i32
  }
  func.func @transform_2(%arg0: i32) -> (i32, i32) {
    %c0_i32 = arith.constant 0 : i32
    %c0_i32_0 = arith.constant 0 : i32
    %c0_i32_1 = arith.constant 0 : i32
    return %c0_i32, %c0_i32_0 : i32, i32
  }
  func.func @transform_3(%arg0: i32) -> (i32, i32) {
    %c0_i32 = arith.constant 0 : i32
    %c0_i32_0 = arith.constant 0 : i32
    %c0_i32_1 = arith.constant 0 : i32
    return %c0_i32, %c0_i32_0 : i32, i32
  }
  func.func @transform_4(%arg0: i32) -> (i32, i32) {
    %c0_i32 = arith.constant 0 : i32
    %c0_i32_0 = arith.constant 0 : i32
    %c0_i32_1 = arith.constant 0 : i32
    return %c0_i32, %c0_i32_0 : i32, i32
  }
  func.func @transform_5(%arg0: i32) -> (i32, i32) {
    %c0_i32 = arith.constant 0 : i32
    %c0_i32_0 = arith.constant 0 : i32
    %c0_i32_1 = arith.constant 0 : i32
    return %c0_i32, %c0_i32_0 : i32, i32
  }
  func.func @transform_6(%arg0: i32) -> (i32, i32) {
    %c0_i32 = arith.constant 0 : i32
    %c0_i32_0 = arith.constant 0 : i32
    %c0_i32_1 = arith.constant 0 : i32
    return %c0_i32, %c0_i32_0 : i32, i32
  }
  func.func @transform_7(%arg0: i32) -> (i32, i32) {
    %c0_i32 = arith.constant 0 : i32
    %c0_i32_0 = arith.constant 0 : i32
    %c0_i32_1 = arith.constant 0 : i32
    return %c0_i32, %c0_i32_0 : i32, i32
  }
  func.func @transform_8(%arg0: i32) -> (i32, i32) {
    %c0_i32 = arith.constant 0 : i32
    %c0_i32_0 = arith.constant 0 : i32
    %c0_i32_1 = arith.constant 0 : i32
    return %c0_i32, %c0_i32_0 : i32, i32
  }
  func.func @transform_9(%arg0: i32) -> (i32, i32) {
    %c0_i32 = arith.constant 0 : i32
    %c0_i32_0 = arith.constant 0 : i32
    %c0_i32_1 = arith.constant 0 : i32
    return %c0_i32, %c0_i32_0 : i32, i32
  }
  func.func @transform_10(%arg0: i32) -> (i32, i32) {
    %c0_i32 = arith.constant 0 : i32
    %c0_i32_0 = arith.constant 0 : i32
    %c0_i32_1 = arith.constant 0 : i32
    return %c0_i32, %c0_i32_0 : i32, i32
  }
  func.func @transform_11(%arg0: i32) -> (i32, i32) {
    %c0_i32 = arith.constant 0 : i32
    %c0_i32_0 = arith.constant 0 : i32
    return %c0_i32, %arg0 : i32, i32
  }
}

</mosaic_0001>

<llo_original>
// kernel: strokenet_forward.1
$region0: #{strokenet_forward.1}
  #allocation0 [shape = 'u32[]', space=smem, size = 0x4, offset = 0x4, fixed_abs, tag = 'smem constant byte address 0x4 - core index']
  #allocation1 [shape = 'u32[144,128]{1,0:T(1,128)}', space=vmem, size = 0x12000, scoped, tag = 'internal scratch']
  #allocation2 [shape = 'f32[1,1]{1,0:T(1,128)S(1)}', space=vmem, size = 0x200, scoped, tag = 'scoped memory for strokenet_forward.1']
  %s0 = inlined_call_operand.vmem [shape: bf16[200,9], index: 0, kind: input, shape index: {}]
  %s1 = inlined_call_operand.vmem [shape: bf16[200,24], index: 1, kind: input, shape index: {}]
  %s2 = inlined_call_operand.vmem [shape: bf16[9,64], index: 2, kind: input, shape index: {}]
  %s3 = inlined_call_operand.vmem [shape: bf16[24,64], index: 3, kind: input, shape index: {}]
  %s4 = inlined_call_operand.vmem [shape: f32[1,64], index: 4, kind: input, shape index: {}]
  %s5 = inlined_call_operand.vmem [shape: bf16[64,40], index: 5, kind: input, shape index: {}]
  %s6 = inlined_call_operand.vmem [shape: f32[1,40], index: 6, kind: input, shape index: {}]
  %s7 = inlined_call_operand.vmem [shape: bf16[40,14], index: 7, kind: input, shape index: {}]
  %s8 = inlined_call_operand.vmem [shape: f32[1,14], index: 8, kind: input, shape index: {}]
  %s9 = inlined_call_operand.vmem [shape: bf16[1,14], index: 9, kind: input, shape index: {}]
  %s10 = inlined_call_operand.<no memory space> [shape: f32[1,1], index: 10, kind: input, shape index: {}]
  %s11 = inlined_call_operand.hbm [shape: f32[1,200], index: 11, kind: output, shape index: {}]
  %s12 = sld [smem:[#allocation0]]
  $region77: #{strokenet_forward.1} parent=0
    _
  %s14 = ssub.s32 1, %s12
  %s15 = scalar_select 0, %s14, %s12
  %v16 = vstv %s10
  %17 = vst [vmem:[#allocation2] sm:$0x1] %v16
  $region1: #{strokenet_forward.1} parent=0
    #allocation3 [shape = 'u8[1024]{0}', space=vmem, size = 0x400, scoped, tag = 'output window, operand 0']
    #allocation4 [shape = 's32[2]{0}', space=sflag, size = 0x8, scoped, tag = 'scoped memory for strokenet_forward.1']
    %18 = vsyncpa [#allocation4], 0
    %s19 = scalar_lea.sflag [#allocation4], 1
    %20 = vsyncpa %s19, 0
    loop: start=0, step=1, limit=4
    $region2: #{strokenet_forward.1} parent=1 // loop_pre_header
      _
    $region3: #{strokenet_forward.1} parent=1 // loop_header
      %s22 = sphi 0, %s26
      %p23 = scmp.ge.s32.totalorder %s22, 4
      %s32 = sphi 0, %s34
      %s35 = sphi 0, %s32
      %s36 = sphi 0, %s35
      %s52 = sphi 0, %s36
      %s58 = sphi 0, %s60
      %s61 = sphi 0, %s58
      %s62 = sphi 0, %s61
      %s78 = sphi 0, %s62
      %s82 = sphi 0, %s82
      %s84 = sphi 0, %s82
      %s85 = sphi 0, %s84
      %s99 = sphi 0, %s85
      %s103 = sphi 0, %s103
      %s105 = sphi 0, %s103
      %s106 = sphi 0, %s105
      %s120 = sphi 0, %s106
      %s124 = sphi 0, %s124
      %s126 = sphi 0, %s124
      %s127 = sphi 0, %s126
      %s141 = sphi 0, %s127
      %s145 = sphi 0, %s145
      %s147 = sphi 0, %s145
      %s148 = sphi 0, %s147
      %s162 = sphi 0, %s148
      %s166 = sphi 0, %s166
      %s168 = sphi 0, %s166
      %s169 = sphi 0, %s168
      %s183 = sphi 0, %s169
      %s187 = sphi 0, %s187
      %s189 = sphi 0, %s187
      %s190 = sphi 0, %s189
      %s204 = sphi 0, %s190
      %s208 = sphi 0, %s208
      %s210 = sphi 0, %s208
      %s211 = sphi 0, %s210
      %s225 = sphi 0, %s211
      %s229 = sphi 0, %s229
      %s231 = sphi 0, %s229
      %s232 = sphi 0, %s231
      %s246 = sphi 0, %s232
      %s250 = sphi 0, %s250
      %s252 = sphi 0, %s250
      %s253 = sphi 0, %s252
      %s267 = sphi 0, %s253
      %s273 = sphi 0, %s275
      %s276 = sphi 0, %s273
      %s277 = sphi 0, %s276
      %s293 = sphi 0, %s277
    $region4: #{strokenet_forward.1} parent=1 // loop_header_branch
      %25 = sbr.rel (%p23) target = $region8
    $region5: #{strokenet_forward.1} parent=1 // loop_body
      %s27 = ssub.s32 %s22, 1
      %s28 = ssub.s32 %s22, 2
      %s29 = sadd.s32 %s22, 1
      %s30 = ssub.s32 %s22, %s29
      %p31 = scmp.eq.s32.totalorder %s30, 0
      %s33 = sadd.s32 %s32, 1
      %s34 = scalar_select %p31, %s32, %s33
      %p37 = pneg %p31
      %p38 = scmp.eq.s32.totalorder %s22, 1
      %p39 = por %p37, %p38
      %p40 = scmp.ne.s32.totalorder %s32, %s35
      %p41 = scmp.eq.s32.totalorder %s22, 0
      %p42 = por %p40, %p41
      %p43 = scmp.ne.s32.totalorder %s32, %s35
      %p44 = scmp.eq.s32.totalorder %s27, 1
      %p45 = por %p43, %p44
      %p46 = scmp.ne.s32.totalorder %s35, %s36
      %p47 = scmp.eq.s32.totalorder %s27, 0
      %p48 = por %p46, %p47
      %p49 = scmp.ne.s32.totalorder %s35, %s36
      %p50 = scmp.eq.s32.totalorder %s28, 1
      %p51 = por %p49, %p50
      %p53 = scmp.ne.s32.totalorder %s36, %s52
      %p54 = scmp.eq.s32.totalorder %s28, 0
      %p55 = por %p53, %p54
      %s56 = ssub.s32 %s22, %s29
      %p57 = scmp.eq.s32.totalorder %s56, 0
      %s59 = sadd.s32 %s58, 1
      %s60 = scalar_select %p57, %s58, %s59
      %p63 = pneg %p57
      %p64 = scmp.eq.s32.totalorder %s22, 1
      %p65 = por %p63, %p64
      %p66 = scmp.ne.s32.totalorder %s58, %s61
      %p67 = scmp.eq.s32.totalorder %s22, 0
      %p68 = por %p66, %p67
      %p69 = scmp.ne.s32.totalorder %s58, %s61
      %p70 = scmp.eq.s32.totalorder %s27, 1
      %p71 = por %p69, %p70
      %p72 = scmp.ne.s32.totalorder %s61, %s62
      %p73 = scmp.eq.s32.totalorder %s27, 0
      %p74 = por %p72, %p73
      %p75 = scmp.ne.s32.totalorder %s61, %s62
      %p76 = scmp.eq.s32.totalorder %s28, 1
      %p77 = por %p75, %p76
      %p79 = scmp.ne.s32.totalorder %s62, %s78
      %p80 = scmp.eq.s32.totalorder %s28, 0
      %p81 = por %p79, %p80
      %s83 = sadd.s32 %s82, 1
      %p86 = scmp.eq.s32.totalorder %s22, 1
      %p87 = scmp.ne.s32.totalorder %s82, %s84
      %p88 = scmp.eq.s32.totalorder %s22, 0
      %p89 = por %p87, %p88
      %p90 = scmp.ne.s32.totalorder %s82, %s84
      %p91 = scmp.eq.s32.totalorder %s27, 1
      %p92 = por %p90, %p91
      %p93 = scmp.ne.s32.totalorder %s84, %s85
      %p94 = scmp.eq.s32.totalorder %s27, 0
      %p95 = por %p93, %p94
      %p96 = scmp.ne.s32.totalorder %s84, %s85
      %p97 = scmp.eq.s32.totalorder %s28, 1
      %p98 = por %p96, %p97
      %p100 = scmp.ne.s32.totalorder %s85, %s99
      %p101 = scmp.eq.s32.totalorder %s28, 0
      %p102 = por %p100, %p101
      %s104 = sadd.s32 %s103, 1
      %p107 = scmp.eq.s32.totalorder %s22, 1
      %p108 = scmp.ne.s32.totalorder %s103, %s105
      %p109 = scmp.eq.s32.totalorder %s22, 0
      %p110 = por %p108, %p109
      %p111 = scmp.ne.s32.totalorder %s103, %s105
      %p112 = scmp.eq.s32.totalorder %s27, 1
      %p113 = por %p111, %p112
      %p114 = scmp.ne.s32.totalorder %s105, %s106
      %p115 = scmp.eq.s32.totalorder %s27, 0
      %p116 = por %p114, %p115
      %p117 = scmp.ne.s32.totalorder %s105, %s106
      %p118 = scmp.eq.s32.totalorder %s28, 1
      %p119 = por %p117, %p118
      %p121 = scmp.ne.s32.totalorder %s106, %s120
      %p122 = scmp.eq.s32.totalorder %s28, 0
      %p123 = por %p121, %p122
      %s125 = sadd.s32 %s124, 1
      %p128 = scmp.eq.s32.totalorder %s22, 1
      %p129 = scmp.ne.s32.totalorder %s124, %s126
      %p130 = scmp.eq.s32.totalorder %s22, 0
      %p131 = por %p129, %p130
      %p132 = scmp.ne.s32.totalorder %s124, %s126
      %p133 = scmp.eq.s32.totalorder %s27, 1
      %p134 = por %p132, %p133
      %p135 = scmp.ne.s32.totalorder %s126, %s127
      %p136 = scmp.eq.s32.totalorder %s27, 0
      %p137 = por %p135, %p136
      %p138 = scmp.ne.s32.totalorder %s126, %s127
      %p139 = scmp.eq.s32.totalorder %s28, 1
      %p140 = por %p138, %p139
      %p142 = scmp.ne.s32.totalorder %s127, %s141
      %p143 = scmp.eq.s32.totalorder %s28, 0
      %p144 = por %p142, %p143
      %s146 = sadd.s32 %s145, 1
      %p149 = scmp.eq.s32.totalorder %s22, 1
      %p150 = scmp.ne.s32.totalorder %s145, %s147
      %p151 = scmp.eq.s32.totalorder %s22, 0
      %p152 = por %p150, %p151
      %p153 = scmp.ne.s32.totalorder %s145, %s147
      %p154 = scmp.eq.s32.totalorder %s27, 1
      %p155 = por %p153, %p154
      %p156 = scmp.ne.s32.totalorder %s147, %s148
      %p157 = scmp.eq.s32.totalorder %s27, 0
      %p158 = por %p156, %p157
      %p159 = scmp.ne.s32.totalorder %s147, %s148
      %p160 = scmp.eq.s32.totalorder %s28, 1
      %p161 = por %p159, %p160
      %p163 = scmp.ne.s32.totalorder %s148, %s162
      %p164 = scmp.eq.s32.totalorder %s28, 0
      %p165 = por %p163, %p164
      %s167 = sadd.s32 %s166, 1
      %p170 = scmp.eq.s32.totalorder %s22, 1
      %p171 = scmp.ne.s32.totalorder %s166, %s168
      %p172 = scmp.eq.s32.totalorder %s22, 0
      %p173 = por %p171, %p172
      %p174 = scmp.ne.s32.totalorder %s166, %s168
      %p175 = scmp.eq.s32.totalorder %s27, 1
      %p176 = por %p174, %p175
      %p177 = scmp.ne.s32.totalorder %s168, %s169
      %p178 = scmp.eq.s32.totalorder %s27, 0
      %p179 = por %p177, %p178
      %p180 = scmp.ne.s32.totalorder %s168, %s169
      %p181 = scmp.eq.s32.totalorder %s28, 1
      %p182 = por %p180, %p181
      %p184 = scmp.ne.s32.totalorder %s169, %s183
      %p185 = scmp.eq.s32.totalorder %s28, 0
      %p186 = por %p184, %p185
      %s188 = sadd.s32 %s187, 1
      %p191 = scmp.eq.s32.totalorder %s22, 1
      %p192 = scmp.ne.s32.totalorder %s187, %s189
      %p193 = scmp.eq.s32.totalorder %s22, 0
      %p194 = por %p192, %p193
      %p195 = scmp.ne.s32.totalorder %s187, %s189
      %p196 = scmp.eq.s32.totalorder %s27, 1
      %p197 = por %p195, %p196
      %p198 = scmp.ne.s32.totalorder %s189, %s190
      %p199 = scmp.eq.s32.totalorder %s27, 0
      %p200 = por %p198, %p199
      %p201 = scmp.ne.s32.totalorder %s189, %s190
      %p202 = scmp.eq.s32.totalorder %s28, 1
      %p203 = por %p201, %p202
      %p205 = scmp.ne.s32.totalorder %s190, %s204
      %p206 = scmp.eq.s32.totalorder %s28, 0
      %p207 = por %p205, %p206
      %s209 = sadd.s32 %s208, 1
      %p212 = scmp.eq.s32.totalorder %s22, 1
      %p213 = scmp.ne.s32.totalorder %s208, %s210
      %p214 = scmp.eq.s32.totalorder %s22, 0
      %p215 = por %p213, %p214
      %p216 = scmp.ne.s32.totalorder %s208, %s210
      %p217 = scmp.eq.s32.totalorder %s27, 1
      %p218 = por %p216, %p217
      %p219 = scmp.ne.s32.totalorder %s210, %s211
      %p220 = scmp.eq.s32.totalorder %s27, 0
      %p221 = por %p219, %p220
      %p222 = scmp.ne.s32.totalorder %s210, %s211
      %p223 = scmp.eq.s32.totalorder %s28, 1
      %p224 = por %p222, %p223
      %p226 = scmp.ne.s32.totalorder %s211, %s225
      %p227 = scmp.eq.s32.totalorder %s28, 0
      %p228 = por %p226, %p227
      %s230 = sadd.s32 %s229, 1
      %p233 = scmp.eq.s32.totalorder %s22, 1
      %p234 = scmp.ne.s32.totalorder %s229, %s231
      %p235 = scmp.eq.s32.totalorder %s22, 0
      %p236 = por %p234, %p235
      %p237 = scmp.ne.s32.totalorder %s229, %s231
      %p238 = scmp.eq.s32.totalorder %s27, 1
      %p239 = por %p237, %p238
      %p240 = scmp.ne.s32.totalorder %s231, %s232
      %p241 = scmp.eq.s32.totalorder %s27, 0
      %p242 = por %p240, %p241
      %p243 = scmp.ne.s32.totalorder %s231, %s232
      %p244 = scmp.eq.s32.totalorder %s28, 1
      %p245 = por %p243, %p244
      %p247 = scmp.ne.s32.totalorder %s232, %s246
      %p248 = scmp.eq.s32.totalorder %s28, 0
      %p249 = por %p247, %p248
      %s251 = sadd.s32 %s250, 1
      %p254 = scmp.eq.s32.totalorder %s22, 1
      %p255 = scmp.ne.s32.totalorder %s250, %s252
      %p256 = scmp.eq.s32.totalorder %s22, 0
      %p257 = por %p255, %p256
      %p258 = scmp.ne.s32.totalorder %s250, %s252
      %p259 = scmp.eq.s32.totalorder %s27, 1
      %p260 = por %p258, %p259
      %p261 = scmp.ne.s32.totalorder %s252, %s253
      %p262 = scmp.eq.s32.totalorder %s27, 0
      %p263 = por %p261, %p262
      %p264 = scmp.ne.s32.totalorder %s252, %s253
      %p265 = scmp.eq.s32.totalorder %s28, 1
      %p266 = por %p264, %p265
      %p268 = scmp.ne.s32.totalorder %s253, %s267
      %p269 = scmp.eq.s32.totalorder %s28, 0
      %p270 = por %p268, %p269
      %s271 = ssub.s32 %s22, %s29
      %p272 = scmp.eq.s32.totalorder %s271, 0
      %s274 = sadd.s32 %s273, 1
      %s275 = scalar_select %p272, %s273, %s274
      %p278 = pneg %p272
      %p279 = scmp.eq.s32.totalorder %s22, 1
      %p280 = por %p278, %p279
      %p281 = scmp.ne.s32.totalorder %s273, %s276
      %p282 = scmp.eq.s32.totalorder %s22, 0
      %p283 = por %p281, %p282
      %p284 = scmp.ne.s32.totalorder %s273, %s276
      %p285 = scmp.eq.s32.totalorder %s27, 1
      %p286 = por %p284, %p285
      %p287 = scmp.ne.s32.totalorder %s276, %s277
      %p288 = scmp.eq.s32.totalorder %s27, 0
      %p289 = por %p287, %p288
      %p290 = scmp.ne.s32.totalorder %s276, %s277
      %p291 = scmp.eq.s32.totalorder %s28, 1
      %p292 = por %p290, %p291
      %p294 = scmp.ne.s32.totalorder %s277, %s293
      %p295 = scmp.eq.s32.totalorder %s28, 0
      %p296 = por %p294, %p295
      %p297 = scmp.le.s32.totalorder 1, %s22
      %p298 = scmp.lt.s32.totalorder %s22, 3
      %p299 = pnand %p297, %p298
      %p300 = pneg %p299
      // Predicated region
      $region9: #{strokenet_forward.1} parent=5 // pred_check
        _
      $region10: #{strokenet_forward.1} parent=5 // pred_check_branch
        %302 = sbr.rel (%p299) target = $region12
      $region11: #{strokenet_forward.1} parent=5 // pred_region
        %s303 = ssub.s32 %s22, 1
        // Predicated region
        $region13: #{strokenet_forward.1} parent=11 // pred_check
          %p304 = pneg %p95
        $region14: #{strokenet_forward.1} parent=11 // pred_check_branch
          %306 = sbr.rel (%p304) target = $region16
        $region15: #{strokenet_forward.1} parent=11 // pred_region
          _
        $region16: #{strokenet_forward.1} parent=11 // pred_fallthru
          _
        // Predicated region
        $region17: #{strokenet_forward.1} parent=11 // pred_check
          %p307 = pneg %p116
        $region18: #{strokenet_forward.1} parent=11 // pred_check_branch
          %309 = sbr.rel (%p307) target = $region20
        $region19: #{strokenet_forward.1} parent=11 // pred_region
          _
        $region20: #{strokenet_forward.1} parent=11 // pred_fallthru
          _
        // Predicated region
        $region21: #{strokenet_forward.1} parent=11 // pred_check
          %p310 = pneg %p137
        $region22: #{strokenet_forward.1} parent=11 // pred_check_branch
          %312 = sbr.rel (%p310) target = $region24
        $region23: #{strokenet_forward.1} parent=11 // pred_region
          _
        $region24: #{strokenet_forward.1} parent=11 // pred_fallthru
          _
        // Predicated region
        $region25: #{strokenet_forward.1} parent=11 // pred_check
          %p313 = pneg %p158
        $region26: #{strokenet_forward.1} parent=11 // pred_check_branch
          %315 = sbr.rel (%p313) target = $region28
        $region27: #{strokenet_forward.1} parent=11 // pred_region
          _
        $region28: #{strokenet_forward.1} parent=11 // pred_fallthru
          _
        // Predicated region
        $region29: #{strokenet_forward.1} parent=11 // pred_check
          %p316 = pneg %p179
        $region30: #{strokenet_forward.1} parent=11 // pred_check_branch
          %318 = sbr.rel (%p316) target = $region32
        $region31: #{strokenet_forward.1} parent=11 // pred_region
          _
        $region32: #{strokenet_forward.1} parent=11 // pred_fallthru
          _
        // Predicated region
        $region33: #{strokenet_forward.1} parent=11 // pred_check
          %p319 = pneg %p200
        $region34: #{strokenet_forward.1} parent=11 // pred_check_branch
          %321 = sbr.rel (%p319) target = $region36
        $region35: #{strokenet_forward.1} parent=11 // pred_region
          _
        $region36: #{strokenet_forward.1} parent=11 // pred_fallthru
          _
        // Predicated region
        $region37: #{strokenet_forward.1} parent=11 // pred_check
          %p322 = pneg %p221
        $region38: #{strokenet_forward.1} parent=11 // pred_check_branch
          %324 = sbr.rel (%p322) target = $region40
        $region39: #{strokenet_forward.1} parent=11 // pred_region
          _
        $region40: #{strokenet_forward.1} parent=11 // pred_fallthru
          _
        // Predicated region
        $region41: #{strokenet_forward.1} parent=11 // pred_check
          %p325 = pneg %p242
        $region42: #{strokenet_forward.1} parent=11 // pred_check_branch
          %327 = sbr.rel (%p325) target = $region44
        $region43: #{strokenet_forward.1} parent=11 // pred_region
          _
        $region44: #{strokenet_forward.1} parent=11 // pred_fallthru
          _
        // Predicated region
        $region45: #{strokenet_forward.1} parent=11 // pred_check
          %p328 = pneg %p263
        $region46: #{strokenet_forward.1} parent=11 // pred_check_branch
          %330 = sbr.rel (%p328) target = $region48
        $region47: #{strokenet_forward.1} parent=11 // pred_region
          _
        $region48: #{strokenet_forward.1} parent=11 // pred_fallthru
          _
      $region12: #{strokenet_forward.1} parent=5 // pred_fallthru
        _
      %p331 = scmp.lt.s32.totalorder %s22, 2
      // Predicated region
      $region49: #{strokenet_forward.1} parent=5 // pred_check
        %p332 = pneg %p331
      $region50: #{strokenet_forward.1} parent=5 // pred_check_branch
        %334 = sbr.rel (%p332) target = $region52
      $region51: #{strokenet_forward.1} parent=5 // pred_region
        // Predicated region
        $region53: #{strokenet_forward.1} parent=51 // pred_check
          %p335 = pneg %p42
        $region54: #{strokenet_forward.1} parent=51 // pred_check_branch
          %337 = sbr.rel (%p335) target = $region56
        $region55: #{strokenet_forward.1} parent=51 // pred_region
          %s338 = smul.u32 16, %s22
          %s339 = ssub.s32 25, %s338
          %p340 = scmp.lt.s32.totalorder %s339, 16
          %s341 = scalar_select %p340, %s339, 16
          %s342 = smul.u32 64, %s341
          %p343 = scmp.lt.s32.totalorder %s338, 24
          %s344 = scalar_select %p343, %s338, 24
          %s345 = smul.addr %s344, 4
          %s346 = scalar_lea.vmem %s0, %s345
          %s347 = smul.u32 16, %s22
          %s348 = ssub.s32 25, %s347
          %p349 = scmp.lt.s32.totalorder %s348, 16
          %s350 = scalar_select %p349, %s348, 16
          %s351 = smul.u32 64, %s350
        $region56: #{strokenet_forward.1} parent=51 // pred_fallthru
          _
        // Predicated region
        $region57: #{strokenet_forward.1} parent=51 // pred_check
          %p352 = pneg %p68
        $region58: #{strokenet_forward.1} parent=51 // pred_check_branch
          %354 = sbr.rel (%p352) target = $region60
        $region59: #{strokenet_forward.1} parent=51 // pred_region
          %s355 = smul.u32 16, %s22
          %s356 = ssub.s32 25, %s355
          %p357 = scmp.lt.s32.totalorder %s356, 16
          %s358 = scalar_select %p357, %s356, 16
          %s359 = smul.u32 64, %s358
          %p360 = scmp.lt.s32.totalorder %s355, 24
          %s361 = scalar_select %p360, %s355, 24
          %s362 = smul.addr %s361, 4
          %s363 = scalar_lea.vmem %s1, %s362
          %s364 = smul.u32 16, %s22
          %s365 = ssub.s32 25, %s364
          %p366 = scmp.lt.s32.totalorder %s365, 16
          %s367 = scalar_select %p366, %s365, 16
          %s368 = smul.u32 64, %s367
        $region60: #{strokenet_forward.1} parent=51 // pred_fallthru
          _
      $region52: #{strokenet_forward.1} parent=5 // pred_fallthru
        _
      %p369 = scmp.le.s32.totalorder 1, %s22
      %p370 = scmp.lt.s32.totalorder %s22, 3
      %p371 = pnand %p369, %p370
      %p372 = pneg %p371
      // Predicated region
      $region61: #{strokenet_forward.1} parent=5 // pred_check
        _
      $region62: #{strokenet_forward.1} parent=5 // pred_check_branch
        %374 = sbr.rel (%p371) target = $region64
      $region63: #{strokenet_forward.1} parent=5 // pred_region
        %s375 = ssub.s32 %s22, 1
        %s376 = smul.u32 16, %s27
        %s377 = ssub.s32 25, %s376
        %p378 = scmp.lt.s32.totalorder %s377, 16
        %s379 = scalar_select %p378, %s377, 16
        %s380 = smul.u32 64, %s379
        %p381 = scmp.lt.s32.totalorder %s376, 24
        %s382 = scalar_select %p381, %s376, 24
        %s383 = smul.addr %s382, 4
        %s384 = scalar_lea.vmem %s0, %s383
        %p385 = pneg %p48
        %p386 = pneg %p45
        %s387 = smul.u32 16, %s27
        %s388 = ssub.s32 25, %s387
        %p389 = scmp.lt.s32.totalorder %s388, 16
        %s390 = scalar_select %p389, %s388, 16
        %s391 = smul.u32 64, %s390
        %p392 = scmp.lt.s32.totalorder %s387, 24
        %s393 = scalar_select %p392, %s387, 24
        %s394 = smul.addr %s393, 4
        %s395 = scalar_lea.vmem %s1, %s394
        %p396 = pneg %p74
        %p397 = pneg %p71
        %p398 = pneg %p95
        %p399 = pneg %p92
        %p400 = pneg %p116
        %p401 = pneg %p113
        %p402 = pneg %p137
        %p403 = pneg %p134
        %p404 = pneg %p158
        %p405 = pneg %p155
        %p406 = pneg %p179
        %p407 = pneg %p176
        %p408 = pneg %p200
        %p409 = pneg %p197
        %p410 = pneg %p221
        %p411 = pneg %p218
        %p412 = pneg %p242
        %p413 = pneg %p239
        %p414 = pneg %p263
        %p415 = pneg %p260
        %p416 = pneg %p289
        %p417 = pneg %p286
        %s418 = sand.u32 %s276, 1
        %s419 = scalar_lea.sflag [#allocation4], %s418
        %s420 = sand.u32 %s276, 1
        %s421 = scalar_lea.vmem [#allocation3], %s420
        %s422 = smul.u32 16, %s27
        %s423 = ssub.s32 25, %s422
        %p424 = scmp.lt.s32.totalorder %s423, 16
        %s425 = scalar_select %p424, %s423, 16
        %s426 = smul.u32 64, %s425
        %p427 = scmp.lt.s32.totalorder %s422, 24
        %s428 = scalar_select %p427, %s422, 24
        %s429 = smul.addr %s428, 4
        %s430 = scalar_lea.vmem %s0, %s429
        %s431 = smul.u32 16, %s27
        %s432 = ssub.s32 25, %s431
        %p433 = scmp.lt.s32.totalorder %s432, 16
        %s434 = scalar_select %p433, %s432, 16
        %s435 = smul.u32 64, %s434
        %s436 = smul.u32 16, %s27
        %s437 = ssub.s32 25, %s436
        %p438 = scmp.lt.s32.totalorder %s437, 16
        %s439 = scalar_select %p438, %s437, 16
        %s440 = smul.u32 64, %s439
        %p441 = scmp.lt.s32.totalorder %s436, 24
        %s442 = scalar_select %p441, %s436, 24
        %s443 = smul.addr %s442, 4
        %s444 = scalar_lea.vmem %s1, %s443
        %s445 = smul.u32 16, %s27
        %s446 = ssub.s32 25, %s445
        %p447 = scmp.lt.s32.totalorder %s446, 16
        %s448 = scalar_select %p447, %s446, 16
        %s449 = smul.u32 64, %s448
        %v451 = vld [vmem:[%s430] sm:$0xf]
        %v452 = vld [vmem:[%s430 + $0x4] sm:$0xf]
        %v453 = vld [vmem:[%s430 + $0x8] sm:$0xf]
        %v454 = vld [vmem:[%s430 + $0xc] sm:$0xf]
        %v455 = vld [vmem:[%s430 + $0x10] sm:$0xf]
        %v456 = vld [vmem:[%s430 + $0x14] sm:$0xf]
        %v457 = vld [vmem:[%s430 + $0x18] sm:$0xf]
        %v458 = vld [vmem:[%s430 + $0x1c] sm:$0xf]
        %v459 = vld [vmem:[%s430 + $0x20] sm:$0xf]
        %v460 = vld [vmem:[%s430 + $0x24] sm:$0xf]
        %v461 = vld [vmem:[%s430 + $0x28] sm:$0xf]
        %v462 = vld [vmem:[%s430 + $0x2c] sm:$0xf]
        %v463 = vld [vmem:[%s430 + $0x30] sm:$0xf]
        %v464 = vld [vmem:[%s430 + $0x34] sm:$0xf]
        %v465 = vld [vmem:[%s430 + $0x38] sm:$0xf]
        %v466 = vld [vmem:[%s430 + $0x3c] sm:$0xf]
        %v467 = vld [vmem:[%s2] sm:$0xf]
        %v468 = vld [vmem:[%s2 + $0x4] sm:$0x1]
        %v469 = vld [vmem:[%s444] sm:$0xf]
        %v470 = vld [vmem:[%s444 + $0x4] sm:$0xf]
        %v471 = vld [vmem:[%s444 + $0x8] sm:$0xf]
        %v472 = vld [vmem:[%s444 + $0xc] sm:$0xf]
        %v473 = vld [vmem:[%s444 + $0x10] sm:$0xf]
        %v474 = vld [vmem:[%s444 + $0x14] sm:$0xf]
        %v475 = vld [vmem:[%s444 + $0x18] sm:$0xf]
        %v476 = vld [vmem:[%s444 + $0x1c] sm:$0xf]
        %v477 = vld [vmem:[%s444 + $0x20] sm:$0xf]
        %v478 = vld [vmem:[%s444 + $0x24] sm:$0xf]
        %v479 = vld [vmem:[%s444 + $0x28] sm:$0xf]
        %v480 = vld [vmem:[%s444 + $0x2c] sm:$0xf]
        %v481 = vld [vmem:[%s444 + $0x30] sm:$0xf]
        %v482 = vld [vmem:[%s444 + $0x34] sm:$0xf]
        %v483 = vld [vmem:[%s444 + $0x38] sm:$0xf]
        %v484 = vld [vmem:[%s444 + $0x3c] sm:$0xf]
        %v485 = vld [vmem:[%s3] sm:$0xf]
        %v486 = vld [vmem:[%s3 + $0x4] sm:$0xf]
        %v487 = vld [vmem:[%s3 + $0x8] sm:$0xf]
        %v504 = vunpack.c.l.b16 %v469
        %v505 = vunpack.c.l.b16 %v470
        %v506 = vunpack.c.l.b16 %v471
        %v507 = vunpack.c.l.b16 %v472
        %v508 = vunpack.c.l.b16 %v473
        %v509 = vunpack.c.l.b16 %v474
        %v510 = vunpack.c.l.b16 %v475
        %v511 = vunpack.c.l.b16 %v476
        %v512 = vunpack.c.l.b16 %v477
        %v513 = vunpack.c.l.b16 %v478
        %v514 = vunpack.c.l.b16 %v479
        %v515 = vunpack.c.l.b16 %v480
        %v516 = vunpack.c.l.b16 %v481
        %v517 = vunpack.c.l.b16 %v482
        %v518 = vunpack.c.l.b16 %v483
        %v519 = vunpack.c.l.b16 %v484
        %v520 = vpack.c.b16 %v505, %v504
        %v521 = vpack.c.b16 %v507, %v506
        %v522 = vpack.c.b16 %v509, %v508
        %v523 = vpack.c.b16 %v511, %v510
        %v524 = vpack.c.b16 %v513, %v512
        %v525 = vpack.c.b16 %v515, %v514
        %v526 = vpack.c.b16 %v517, %v516
        %v527 = vpack.c.b16 %v519, %v518
        %v531 = vunpack.c.l.b16 %v485
        %v532 = vunpack.c.l.b16 %v486
        %v533 = vunpack.c.l.b16 %v487
        %v534 = vpack.c.b16 %v532, %v531
        %v535 = vpack.c.b16 %v533, %v533
        %vm537 = vcmask 195584
        %v539 = vsel %vm537, %v520, 0
        %v542 = vsel %vm537, %v521, 0
        %v545 = vsel %vm537, %v522, 0
        %v548 = vsel %vm537, %v523, 0
        %v551 = vsel %vm537, %v524, 0
        %v554 = vsel %vm537, %v525, 0
        %v557 = vsel %vm537, %v526, 0
        %v560 = vsel %vm537, %v527, 0
        %vm562 = vcmask 1043456
        %v564 = vsel %vm562, %v535, 0
        %566 = vmatprep.subr.bf16.mxu0 0
        %567 = vmatpush1.bf16.msra.mxu0 %v534
        %568 = vmatprep.subr.bf16.mxu0 0
        %569 = vmatpush1.bf16.msra.mxu0 %v564
        %570 = vmatprep.subr.bf16.mxu0 0
        %571 = vmatpush1.bf16.msra.mxu0 0
        %572 = vmatprep.subr.bf16.mxu0 0
        %573 = vmatpush1.bf16.msra.mxu0 0
        %574 = vmatprep.subr.bf16.mxu0 0
        %575 = vmatpush1.bf16.msra.mxu0 0
        %576 = vmatprep.subr.bf16.mxu0 0
        %577 = vmatpush1.bf16.msra.mxu0 0
        %578 = vmatprep.subr.bf16.mxu0 0
        %579 = vmatpush1.bf16.msra.mxu0 0
        %580 = vmatprep.subr.bf16.mxu0 0
        %581 = vmatpush1.bf16.msra.mxu0 0
        %582 = vmatprep.subr.bf16.mxu0 0
        %583 = vmatpush1.bf16.msra.mxu0 0
        %584 = vmatprep.subr.bf16.mxu0 0
        %585 = vmatpush1.bf16.msra.mxu0 0
        %586 = vmatprep.subr.bf16.mxu0 0
        %587 = vmatpush1.bf16.msra.mxu0 0
        %588 = vmatprep.subr.bf16.mxu0 0
        %589 = vmatpush1.bf16.msra.mxu0 0
        %590 = vmatprep.subr.bf16.mxu0 0
        %591 = vmatpush1.bf16.msra.mxu0 0
        %592 = vmatprep.subr.bf16.mxu0 0
        %593 = vmatpush1.bf16.msra.mxu0 0
        %594 = vmatprep.subr.bf16.mxu0 0
        %595 = vmatpush1.bf16.msra.mxu0 0
        %596 = vmatprep.subr.bf16.mxu0 0
        %597 = vmatpush1.bf16.msra.mxu0 0
        %598 = vmatprep.mubr.bf16.mxu0 0
        %599 = vmatmul.mubr.bf16.gmra.mrb[0].mxu0 %v539
        %v600 = vpop.f32.mrb[0].mxu0
        %v601 = vadd.f32 0.0, %v600
        %v602 = vpop.f32.mrb[0].mxu0
        %v603 = vpop.f32.mrb[0].mxu0
        %v604 = vadd.f32 0.0, %v603
        %v605 = vpop.f32.mrb[0].mxu0
        %606 = vmatprep.mubr.bf16.mxu0 0
        %607 = vmatmul.mubr.bf16.gmra.mrb[0].mxu0 %v542
        %v608 = vpop.f32.mrb[0].mxu0
        %v609 = vadd.f32 0.0, %v608
        %v610 = vpop.f32.mrb[0].mxu0
        %v611 = vpop.f32.mrb[0].mxu0
        %v612 = vadd.f32 0.0, %v611
        %v613 = vpop.f32.mrb[0].mxu0
        %614 = vmatprep.mubr.bf16.mxu0 0
        %615 = vmatmul.mubr.bf16.gmra.mrb[0].mxu0 %v545
        %v616 = vpop.f32.mrb[0].mxu0
        %v617 = vadd.f32 0.0, %v616
        %v618 = vpop.f32.mrb[0].mxu0
        %v619 = vpop.f32.mrb[0].mxu0
        %v620 = vadd.f32 0.0, %v619
        %v621 = vpop.f32.mrb[0].mxu0
        %622 = vmatprep.mubr.bf16.mxu0 0
        %623 = vmatmul.mubr.bf16.gmra.mrb[0].mxu0 %v548
        %v624 = vpop.f32.mrb[0].mxu0
        %v625 = vadd.f32 0.0, %v624
        %v626 = vpop.f32.mrb[0].mxu0
        %v627 = vpop.f32.mrb[0].mxu0
        %v628 = vadd.f32 0.0, %v627
        %v629 = vpop.f32.mrb[0].mxu0
        %630 = vmatprep.mubr.bf16.mxu0 0
        %631 = vmatmul.mubr.bf16.gmra.mrb[0].mxu0 %v551
        %v632 = vpop.f32.mrb[0].mxu0
        %v633 = vadd.f32 0.0, %v632
        %v634 = vpop.f32.mrb[0].mxu0
        %v635 = vpop.f32.mrb[0].mxu0
        %v636 = vadd.f32 0.0, %v635
        %v637 = vpop.f32.mrb[0].mxu0
        %638 = vmatprep.mubr.bf16.mxu0 0
        %639 = vmatmul.mubr.bf16.gmra.mrb[0].mxu0 %v554
        %v640 = vpop.f32.mrb[0].mxu0
        %v641 = vadd.f32 0.0, %v640
        %v642 = vpop.f32.mrb[0].mxu0
        %v643 = vpop.f32.mrb[0].mxu0
        %v644 = vadd.f32 0.0, %v643
        %v645 = vpop.f32.mrb[0].mxu0
        %646 = vmatprep.mubr.bf16.mxu0 0
        %647 = vmatmul.mubr.bf16.gmra.mrb[0].mxu0 %v557
        %v648 = vpop.f32.mrb[0].mxu0
        %v649 = vadd.f32 0.0, %v648
        %v650 = vpop.f32.mrb[0].mxu0
        %v651 = vpop.f32.mrb[0].mxu0
        %v652 = vadd.f32 0.0, %v651
        %v653 = vpop.f32.mrb[0].mxu0
        %654 = vmatprep.mubr.bf16.mxu0 0
        %655 = vmatmul.mubr.bf16.gmra.mrb[0].mxu0 %v560
        %v656 = vpop.f32.mrb[0].mxu0
        %v657 = vadd.f32 0.0, %v656
        %v658 = vpop.f32.mrb[0].mxu0
        %v659 = vpop.f32.mrb[0].mxu0
        %v660 = vadd.f32 0.0, %v659
        %v661 = vpop.f32.mrb[0].mxu0
        %662 = vdwg.mxu0
        %v679 = vunpack.c.l.b16 %v451
        %v680 = vunpack.c.l.b16 %v452
        %v681 = vunpack.c.l.b16 %v453
        %v682 = vunpack.c.l.b16 %v454
        %v683 = vunpack.c.l.b16 %v455
        %v684 = vunpack.c.l.b16 %v456
        %v685 = vunpack.c.l.b16 %v457
        %v686 = vunpack.c.l.b16 %v458
        %v687 = vunpack.c.l.b16 %v459
        %v688 = vunpack.c.l.b16 %v460
        %v689 = vunpack.c.l.b16 %v461
        %v690 = vunpack.c.l.b16 %v462
        %v691 = vunpack.c.l.b16 %v463
        %v692 = vunpack.c.l.b16 %v464
        %v693 = vunpack.c.l.b16 %v465
        %v694 = vunpack.c.l.b16 %v466
        %v695 = vpack.c.b16 %v680, %v679
        %v696 = vpack.c.b16 %v682, %v681
        %v697 = vpack.c.b16 %v684, %v683
        %v698 = vpack.c.b16 %v686, %v685
        %v699 = vpack.c.b16 %v688, %v687
        %v700 = vpack.c.b16 %v690, %v689
        %v701 = vpack.c.b16 %v692, %v691
        %v702 = vpack.c.b16 %v694, %v693
        %v705 = vunpack.c.l.b16 %v467
        %v706 = vunpack.c.l.b16 %v468
        %v707 = vpack.c.b16 %v706, %v705
        %vm708 = vcmask 72704
        %v710 = vsel %vm708, %v695, 0
        %v713 = vsel %vm708, %v696, 0
        %v716 = vsel %vm708, %v697, 0
        %v719 = vsel %vm708, %v698, 0
        %v722 = vsel %vm708, %v699, 0
        %v725 = vsel %vm708, %v700, 0
        %v728 = vsel %vm708, %v701, 0
        %v731 = vsel %vm708, %v702, 0
        %vm733 = vcmask 1044480
        %v734 = vsel %vm562, 4294967295, 65535
        %v735 = vsel %vm733, %v734, 0
        %v737 = vand.u32 %v707, %v735
        %739 = vmatprep.subr.bf16.mxu0 0
        %740 = vmatpush1.bf16.msra.mxu0 %v737
        %741 = vmatprep.subr.bf16.mxu0 0
        %742 = vmatpush1.bf16.msra.mxu0 0
        %743 = vmatprep.subr.bf16.mxu0 0
        %744 = vmatpush1.bf16.msra.mxu0 0
        %745 = vmatprep.subr.bf16.mxu0 0
        %746 = vmatpush1.bf16.msra.mxu0 0
        %747 = vmatprep.subr.bf16.mxu0 0
        %748 = vmatpush1.bf16.msra.mxu0 0
        %749 = vmatprep.subr.bf16.mxu0 0
        %750 = vmatpush1.bf16.msra.mxu0 0
        %751 = vmatprep.subr.bf16.mxu0 0
        %752 = vmatpush1.bf16.msra.mxu0 0
        %753 = vmatprep.subr.bf16.mxu0 0
        %754 = vmatpush1.bf16.msra.mxu0 0
        %755 = vmatprep.subr.bf16.mxu0 0
        %756 = vmatpush1.bf16.msra.mxu0 0
        %757 = vmatprep.subr.bf16.mxu0 0
        %758 = vmatpush1.bf16.msra.mxu0 0
        %759 = vmatprep.subr.bf16.mxu0 0
        %760 = vmatpush1.bf16.msra.mxu0 0
        %761 = vmatprep.subr.bf16.mxu0 0
        %762 = vmatpush1.bf16.msra.mxu0 0
        %763 = vmatprep.subr.bf16.mxu0 0
        %764 = vmatpush1.bf16.msra.mxu0 0
        %765 = vmatprep.subr.bf16.mxu0 0
        %766 = vmatpush1.bf16.msra.mxu0 0
        %767 = vmatprep.subr.bf16.mxu0 0
        %768 = vmatpush1.bf16.msra.mxu0 0
        %769 = vmatprep.subr.bf16.mxu0 0
        %770 = vmatpush1.bf16.msra.mxu0 0
        %771 = vmatprep.mubr.bf16.mxu0 0
        %772 = vmatmul.mubr.bf16.gmra.mrb[0].mxu0 %v710
        %v773 = vpop.f32.mrb[0].mxu0
        %v774 = vadd.f32 %v601, %v773
        %v775 = vpop.f32.mrb[0].mxu0
        %v776 = vpop.f32.mrb[0].mxu0
        %v777 = vadd.f32 %v604, %v776
        %v778 = vpop.f32.mrb[0].mxu0
        %779 = vmatprep.mubr.bf16.mxu0 0
        %780 = vmatmul.mubr.bf16.gmra.mrb[0].mxu0 %v713
        %v781 = vpop.f32.mrb[0].mxu0
        %v782 = vadd.f32 %v609, %v781
        %v783 = vpop.f32.mrb[0].mxu0
        %v784 = vpop.f32.mrb[0].mxu0
        %v785 = vadd.f32 %v612, %v784
        %v786 = vpop.f32.mrb[0].mxu0
        %787 = vmatprep.mubr.bf16.mxu0 0
        %788 = vmatmul.mubr.bf16.gmra.mrb[0].mxu0 %v716
        %v789 = vpop.f32.mrb[0].mxu0
        %v790 = vadd.f32 %v617, %v789
        %v791 = vpop.f32.mrb[0].mxu0
        %v792 = vpop.f32.mrb[0].mxu0
        %v793 = vadd.f32 %v620, %v792
        %v794 = vpop.f32.mrb[0].mxu0
        %795 = vmatprep.mubr.bf16.mxu0 0
        %796 = vmatmul.mubr.bf16.gmra.mrb[0].mxu0 %v719
        %v797 = vpop.f32.mrb[0].mxu0
        %v798 = vadd.f32 %v625, %v797
        %v799 = vpop.f32.mrb[0].mxu0
        %v800 = vpop.f32.mrb[0].mxu0
        %v801 = vadd.f32 %v628, %v800
        %v802 = vpop.f32.mrb[0].mxu0
        %803 = vmatprep.mubr.bf16.mxu0 0
        %804 = vmatmul.mubr.bf16.gmra.mrb[0].mxu0 %v722
        %v805 = vpop.f32.mrb[0].mxu0
        %v806 = vadd.f32 %v633, %v805
        %v807 = vpop.f32.mrb[0].mxu0
        %v808 = vpop.f32.mrb[0].mxu0
        %v809 = vadd.f32 %v636, %v808
        %v810 = vpop.f32.mrb[0].mxu0
        %811 = vmatprep.mubr.bf16.mxu0 0
        %812 = vmatmul.mubr.bf16.gmra.mrb[0].mxu0 %v725
        %v813 = vpop.f32.mrb[0].mxu0
        %v814 = vadd.f32 %v641, %v813
        %v815 = vpop.f32.mrb[0].mxu0
        %v816 = vpop.f32.mrb[0].mxu0
        %v817 = vadd.f32 %v644, %v816
        %v818 = vpop.f32.mrb[0].mxu0
        %819 = vmatprep.mubr.bf16.mxu0 0
        %820 = vmatmul.mubr.bf16.gmra.mrb[0].mxu0 %v728
        %v821 = vpop.f32.mrb[0].mxu0
        %v822 = vadd.f32 %v649, %v821
        %v823 = vpop.f32.mrb[0].mxu0
        %v824 = vpop.f32.mrb[0].mxu0
        %v825 = vadd.f32 %v652, %v824
        %v826 = vpop.f32.mrb[0].mxu0
        %827 = vmatprep.mubr.bf16.mxu0 0
        %828 = vmatmul.mubr.bf16.gmra.mrb[0].mxu0 %v731
        %v829 = vpop.f32.mrb[0].mxu0
        %v830 = vadd.f32 %v657, %v829
        %v831 = vpop.f32.mrb[0].mxu0
        %v832 = vpop.f32.mrb[0].mxu0
        %v833 = vadd.f32 %v660, %v832
        %v834 = vpop.f32.mrb[0].mxu0
        %835 = vdwg.mxu0
        %v836 = vld [vmem:[%s4] sm:$0x1]
        %v838 = vlaneseq
        %v839 = vshrl.u32 %v838, 7
        %v840 = vsub.s32 0, %v839
        %v841 = vrot.slane %v836, %v840
        %v843 = vadd.f32 %v774, %v841
        %v844 = vadd.f32 %v777, %v841
        %v845 = vadd.f32 %v782, %v841
        %v846 = vadd.f32 %v785, %v841
        %v847 = vadd.f32 %v790, %v841
        %v848 = vadd.f32 %v793, %v841
        %v849 = vadd.f32 %v798, %v841
        %v850 = vadd.f32 %v801, %v841
        %v851 = vadd.f32 %v806, %v841
        %v852 = vadd.f32 %v809, %v841
        %v853 = vadd.f32 %v814, %v841
        %v854 = vadd.f32 %v817, %v841
        %v855 = vadd.f32 %v822, %v841
        %v856 = vadd.f32 %v825, %v841
        %v857 = vadd.f32 %v830, %v841
        %v858 = vadd.f32 %v833, %v841
        %v859 = vmax.f32 %v843, 0.0
        %v860 = vmax.f32 %v844, 0.0
        %v861 = vmax.f32 %v845, 0.0
        %v862 = vmax.f32 %v846, 0.0
        %v863 = vmax.f32 %v847, 0.0
        %v864 = vmax.f32 %v848, 0.0
        %v865 = vmax.f32 %v849, 0.0
        %v866 = vmax.f32 %v850, 0.0
        %v867 = vmax.f32 %v851, 0.0
        %v868 = vmax.f32 %v852, 0.0
        %v869 = vmax.f32 %v853, 0.0
        %v870 = vmax.f32 %v854, 0.0
        %v871 = vmax.f32 %v855, 0.0
        %v872 = vmax.f32 %v856, 0.0
        %v873 = vmax.f32 %v857, 0.0
        %v874 = vmax.f32 %v858, 0.0
        %v875 = vpack.c.bf16 %v860, %v859
        %v876 = vpack.c.bf16 %v862, %v861
        %v877 = vpack.c.bf16 %v864, %v863
        %v878 = vpack.c.bf16 %v866, %v865
        %v879 = vpack.c.bf16 %v868, %v867
        %v880 = vpack.c.bf16 %v870, %v869
        %v881 = vpack.c.bf16 %v872, %v871
        %v882 = vpack.c.bf16 %v874, %v873
        %v883 = vld [vmem:[%s5] sm:$0xf]
        %v884 = vld [vmem:[%s5 + $0x4] sm:$0xf]
        %v885 = vld [vmem:[%s5 + $0x8] sm:$0xf]
        %v886 = vld [vmem:[%s5 + $0xc] sm:$0xf]
        %v887 = vld [vmem:[%s5 + $0x10] sm:$0xf]
        %v888 = vld [vmem:[%s5 + $0x14] sm:$0xf]
        %v889 = vld [vmem:[%s5 + $0x18] sm:$0xf]
        %v890 = vld [vmem:[%s5 + $0x1c] sm:$0xf]
        %v891 = vld [vmem:[%s6] sm:$0x1]
        %v893 = vlaneseq
        %v894 = vshrl.u32 %v893, 7
        %v895 = vsub.s32 0, %v894
        %v896 = vrot.slane %v891, %v895
        %v906 = vunpack.c.l.b16 %v883
        %v907 = vunpack.c.l.b16 %v884
        %v908 = vunpack.c.l.b16 %v885
        %v909 = vunpack.c.l.b16 %v886
        %v910 = vunpack.c.l.b16 %v887
        %v911 = vunpack.c.l.b16 %v888
        %v912 = vunpack.c.l.b16 %v889
        %v913 = vunpack.c.l.b16 %v890
        %v914 = vpack.c.b16 %v907, %v906
        %v915 = vpack.c.b16 %v909, %v908
        %v916 = vpack.c.b16 %v911, %v910
        %v917 = vpack.c.b16 %v913, %v912
        %vm922 = vcmask 523264
        %v924 = vsel %vm922, %v875, 0
        %v927 = vsel %vm922, %v876, 0
        %v930 = vsel %vm922, %v877, 0
        %v933 = vsel %vm922, %v878, 0
        %v936 = vsel %vm922, %v879, 0
        %v939 = vsel %vm922, %v880, 0
        %v942 = vsel %vm922, %v881, 0
        %v945 = vsel %vm922, %v882, 0
        %947 = vmatprep.subr.bf16.mxu0 0
        %948 = vmatpush1.bf16.msra.mxu0 %v914
        %949 = vmatprep.subr.bf16.mxu0 0
        %950 = vmatpush1.bf16.msra.mxu0 %v915
        %951 = vmatprep.subr.bf16.mxu0 0
        %952 = vmatpush1.bf16.msra.mxu0 %v916
        %953 = vmatprep.subr.bf16.mxu0 0
        %954 = vmatpush1.bf16.msra.mxu0 %v917
        %955 = vmatprep.subr.bf16.mxu0 0
        %956 = vmatpush1.bf16.msra.mxu0 0
        %957 = vmatprep.subr.bf16.mxu0 0
        %958 = vmatpush1.bf16.msra.mxu0 0
        %959 = vmatprep.subr.bf16.mxu0 0
        %960 = vmatpush1.bf16.msra.mxu0 0
        %961 = vmatprep.subr.bf16.mxu0 0
        %962 = vmatpush1.bf16.msra.mxu0 0
        %963 = vmatprep.subr.bf16.mxu0 0
        %964 = vmatpush1.bf16.msra.mxu0 0
        %965 = vmatprep.subr.bf16.mxu0 0
        %966 = vmatpush1.bf16.msra.mxu0 0
        %967 = vmatprep.subr.bf16.mxu0 0
        %968 = vmatpush1.bf16.msra.mxu0 0
        %969 = vmatprep.subr.bf16.mxu0 0
        %970 = vmatpush1.bf16.msra.mxu0 0
        %971 = vmatprep.subr.bf16.mxu0 0
        %972 = vmatpush1.bf16.msra.mxu0 0
        %973 = vmatprep.subr.bf16.mxu0 0
        %974 = vmatpush1.bf16.msra.mxu0 0
        %975 = vmatprep.subr.bf16.mxu0 0
        %976 = vmatpush1.bf16.msra.mxu0 0
        %977 = vmatprep.subr.bf16.mxu0 0
        %978 = vmatpush1.bf16.msra.mxu0 0
        %979 = vmatprep.mubr.bf16.mxu0 0
        %980 = vmatmul.mubr.bf16.gmra.mrb[0].mxu0 %v924
        %v981 = vpop.f32.mrb[0].mxu0
        %v982 = vadd.f32 %v896, %v981
        %v983 = vpop.f32.mrb[0].mxu0
        %v984 = vpop.f32.mrb[0].mxu0
        %v985 = vadd.f32 %v896, %v984
        %v986 = vpop.f32.mrb[0].mxu0
        %987 = vmatprep.mubr.bf16.mxu0 0
        %988 = vmatmul.mubr.bf16.gmra.mrb[0].mxu0 %v927
        %v989 = vpop.f32.mrb[0].mxu0
        %v990 = vadd.f32 %v896, %v989
        %v991 = vpop.f32.mrb[0].mxu0
        %v992 = vpop.f32.mrb[0].mxu0
        %v993 = vadd.f32 %v896, %v992
        %v994 = vpop.f32.mrb[0].mxu0
        %995 = vmatprep.mubr.bf16.mxu0 0
        %996 = vmatmul.mubr.bf16.gmra.mrb[0].mxu0 %v930
        %v997 = vpop.f32.mrb[0].mxu0
        %v998 = vadd.f32 %v896, %v997
        %v999 = vpop.f32.mrb[0].mxu0
        %v1000 = vpop.f32.mrb[0].mxu0
        %v1001 = vadd.f32 %v896, %v1000
        %v1002 = vpop.f32.mrb[0].mxu0
        %1003 = vmatprep.mubr.bf16.mxu0 0
        %1004 = vmatmul.mubr.bf16.gmra.mrb[0].mxu0 %v933
        %v1005 = vpop.f32.mrb[0].mxu0
        %v1006 = vadd.f32 %v896, %v1005
        %v1007 = vpop.f32.mrb[0].mxu0
        %v1008 = vpop.f32.mrb[0].mxu0
        %v1009 = vadd.f32 %v896, %v1008
        %v1010 = vpop.f32.mrb[0].mxu0
        %1011 = vmatprep.mubr.bf16.mxu0 0
        %1012 = vmatmul.mubr.bf16.gmra.mrb[0].mxu0 %v936
        %v1013 = vpop.f32.mrb[0].mxu0
        %v1014 = vadd.f32 %v896, %v1013
        %v1015 = vpop.f32.mrb[0].mxu0
        %v1016 = vpop.f32.mrb[0].mxu0
        %v1017 = vadd.f32 %v896, %v1016
        %v1018 = vpop.f32.mrb[0].mxu0
        %1019 = vmatprep.mubr.bf16.mxu0 0
        %1020 = vmatmul.mubr.bf16.gmra.mrb[0].mxu0 %v939
        %v1021 = vpop.f32.mrb[0].mxu0
        %v1022 = vadd.f32 %v896, %v1021
        %v1023 = vpop.f32.mrb[0].mxu0
        %v1024 = vpop.f32.mrb[0].mxu0
        %v1025 = vadd.f32 %v896, %v1024
        %v1026 = vpop.f32.mrb[0].mxu0
        %1027 = vmatprep.mubr.bf16.mxu0 0
        %1028 = vmatmul.mubr.bf16.gmra.mrb[0].mxu0 %v942
        %v1029 = vpop.f32.mrb[0].mxu0
        %v1030 = vadd.f32 %v896, %v1029
        %v1031 = vpop.f32.mrb[0].mxu0
        %v1032 = vpop.f32.mrb[0].mxu0
        %v1033 = vadd.f32 %v896, %v1032
        %v1034 = vpop.f32.mrb[0].mxu0
        %1035 = vmatprep.mubr.bf16.mxu0 0
        %1036 = vmatmul.mubr.bf16.gmra.mrb[0].mxu0 %v945
        %v1037 = vpop.f32.mrb[0].mxu0
        %v1038 = vadd.f32 %v896, %v1037
        %v1039 = vpop.f32.mrb[0].mxu0
        %v1040 = vpop.f32.mrb[0].mxu0
        %v1041 = vadd.f32 %v896, %v1040
        %v1042 = vpop.f32.mrb[0].mxu0
        %1043 = vdwg.mxu0
        %v1044 = vmax.f32 %v982, 0.0
        %v1045 = vmax.f32 %v985, 0.0
        %v1046 = vmax.f32 %v990, 0.0
        %v1047 = vmax.f32 %v993, 0.0
        %v1048 = vmax.f32 %v998, 0.0
        %v1049 = vmax.f32 %v1001, 0.0
        %v1050 = vmax.f32 %v1006, 0.0
        %v1051 = vmax.f32 %v1009, 0.0
        %v1052 = vmax.f32 %v1014, 0.0
        %v1053 = vmax.f32 %v1017, 0.0
        %v1054 = vmax.f32 %v1022, 0.0
        %v1055 = vmax.f32 %v1025, 0.0
        %v1056 = vmax.f32 %v1030, 0.0
        %v1057 = vmax.f32 %v1033, 0.0
        %v1058 = vmax.f32 %v1038, 0.0
        %v1059 = vmax.f32 %v1041, 0.0
        %v1060 = vpack.c.bf16 %v1045, %v1044
        %v1061 = vpack.c.bf16 %v1047, %v1046
        %v1062 = vpack.c.bf16 %v1049, %v1048
        %v1063 = vpack.c.bf16 %v1051, %v1050
        %v1064 = vpack.c.bf16 %v1053, %v1052
        %v1065 = vpack.c.bf16 %v1055, %v1054
        %v1066 = vpack.c.bf16 %v1057, %v1056
        %v1067 = vpack.c.bf16 %v1059, %v1058
        %v1068 = vld [vmem:[%s7] sm:$0xf]
        %v1069 = vld [vmem:[%s7 + $0x4] sm:$0xf]
        %v1070 = vld [vmem:[%s7 + $0x8] sm:$0xf]
        %v1071 = vld [vmem:[%s7 + $0xc] sm:$0xf]
        %v1072 = vld [vmem:[%s7 + $0x10] sm:$0xf]
        %v1073 = vld [vmem:[%s8] sm:$0x1]
        %v1075 = vlaneseq
        %v1076 = vshrl.u32 %v1075, 7
        %v1077 = vsub.s32 0, %v1076
        %v1078 = vrot.slane %v1073, %v1077
        %v1085 = vunpack.c.l.b16 %v1068
        %v1086 = vunpack.c.l.b16 %v1069
        %v1087 = vunpack.c.l.b16 %v1070
        %v1088 = vunpack.c.l.b16 %v1071
        %v1089 = vunpack.c.l.b16 %v1072
        %v1090 = vpack.c.b16 %v1086, %v1085
        %v1091 = vpack.c.b16 %v1088, %v1087
        %v1092 = vpack.c.b16 %v1089, %v1089
        %vm1095 = vcmask 326656
        %v1097 = vsel %vm1095, %v1060, 0
        %v1100 = vsel %vm1095, %v1061, 0
        %v1103 = vsel %vm1095, %v1062, 0
        %v1106 = vsel %vm1095, %v1063, 0
        %v1109 = vsel %vm1095, %v1064, 0
        %v1112 = vsel %vm1095, %v1065, 0
        %v1115 = vsel %vm1095, %v1066, 0
        %v1118 = vsel %vm1095, %v1067, 0
        %v1121 = vsel %vm562, %v1092, 0
        %1123 = vmatprep.subr.bf16.mxu0 0
        %1124 = vmatpush1.bf16.msra.mxu0 %v1090
        %1125 = vmatprep.subr.bf16.mxu0 0
        %1126 = vmatpush1.bf16.msra.mxu0 %v1091
        %1127 = vmatprep.subr.bf16.mxu0 0
        %1128 = vmatpush1.bf16.msra.mxu0 %v1121
        %1129 = vmatprep.subr.bf16.mxu0 0
        %1130 = vmatpush1.bf16.msra.mxu0 0
        %1131 = vmatprep.subr.bf16.mxu0 0
        %1132 = vmatpush1.bf16.msra.mxu0 0
        %1133 = vmatprep.subr.bf16.mxu0 0
        %1134 = vmatpush1.bf16.msra.mxu0 0
        %1135 = vmatprep.subr.bf16.mxu0 0
        %1136 = vmatpush1.bf16.msra.mxu0 0
        %1137 = vmatprep.subr.bf16.mxu0 0
        %1138 = vmatpush1.bf16.msra.mxu0 0
        %1139 = vmatprep.subr.bf16.mxu0 0
        %1140 = vmatpush1.bf16.msra.mxu0 0
        %1141 = vmatprep.subr.bf16.mxu0 0
        %1142 = vmatpush1.bf16.msra.mxu0 0
        %1143 = vmatprep.subr.bf16.mxu0 0
        %1144 = vmatpush1.bf16.msra.mxu0 0
        %1145 = vmatprep.subr.bf16.mxu0 0
        %1146 = vmatpush1.bf16.msra.mxu0 0
        %1147 = vmatprep.subr.bf16.mxu0 0
        %1148 = vmatpush1.bf16.msra.mxu0 0
        %1149 = vmatprep.subr.bf16.mxu0 0
        %1150 = vmatpush1.bf16.msra.mxu0 0
        %1151 = vmatprep.subr.bf16.mxu0 0
        %1152 = vmatpush1.bf16.msra.mxu0 0
        %1153 = vmatprep.subr.bf16.mxu0 0
        %1154 = vmatpush1.bf16.msra.mxu0 0
        %1155 = vmatprep.mubr.bf16.mxu0 0
        %1156 = vmatmul.mubr.bf16.gmra.mrb[0].mxu0 %v1097
        %v1157 = vpop.f32.mrb[0].mxu0
        %v1158 = vadd.f32 %v1078, %v1157
        %v1159 = vpop.f32.mrb[0].mxu0
        %v1160 = vpop.f32.mrb[0].mxu0
        %v1161 = vadd.f32 %v1078, %v1160
        %v1162 = vpop.f32.mrb[0].mxu0
        %1163 = vmatprep.mubr.bf16.mxu0 0
        %1164 = vmatmul.mubr.bf16.gmra.mrb[0].mxu0 %v1100
        %v1165 = vpop.f32.mrb[0].mxu0
        %v1166 = vadd.f32 %v1078, %v1165
        %v1167 = vpop.f32.mrb[0].mxu0
        %v1168 = vpop.f32.mrb[0].mxu0
        %v1169 = vadd.f32 %v1078, %v1168
        %v1170 = vpop.f32.mrb[0].mxu0
        %1171 = vmatprep.mubr.bf16.mxu0 0
        %1172 = vmatmul.mubr.bf16.gmra.mrb[0].mxu0 %v1103
        %v1173 = vpop.f32.mrb[0].mxu0
        %v1174 = vadd.f32 %v1078, %v1173
        %v1175 = vpop.f32.mrb[0].mxu0
        %v1176 = vpop.f32.mrb[0].mxu0
        %v1177 = vadd.f32 %v1078, %v1176
        %v1178 = vpop.f32.mrb[0].mxu0
        %1179 = vmatprep.mubr.bf16.mxu0 0
        %1180 = vmatmul.mubr.bf16.gmra.mrb[0].mxu0 %v1106
        %v1181 = vpop.f32.mrb[0].mxu0
        %v1182 = vadd.f32 %v1078, %v1181
        %v1183 = vpop.f32.mrb[0].mxu0
        %v1184 = vpop.f32.mrb[0].mxu0
        %v1185 = vadd.f32 %v1078, %v1184
        %v1186 = vpop.f32.mrb[0].mxu0
        %1187 = vmatprep.mubr.bf16.mxu0 0
        %1188 = vmatmul.mubr.bf16.gmra.mrb[0].mxu0 %v1109
        %v1189 = vpop.f32.mrb[0].mxu0
        %v1190 = vadd.f32 %v1078, %v1189
        %v1191 = vpop.f32.mrb[0].mxu0
        %v1192 = vpop.f32.mrb[0].mxu0
        %v1193 = vadd.f32 %v1078, %v1192
        %v1194 = vpop.f32.mrb[0].mxu0
        %1195 = vmatprep.mubr.bf16.mxu0 0
        %1196 = vmatmul.mubr.bf16.gmra.mrb[0].mxu0 %v1112
        %v1197 = vpop.f32.mrb[0].mxu0
        %v1198 = vadd.f32 %v1078, %v1197
        %v1199 = vpop.f32.mrb[0].mxu0
        %v1200 = vpop.f32.mrb[0].mxu0
        %v1201 = vadd.f32 %v1078, %v1200
        %v1202 = vpop.f32.mrb[0].mxu0
        %1203 = vmatprep.mubr.bf16.mxu0 0
        %1204 = vmatmul.mubr.bf16.gmra.mrb[0].mxu0 %v1115
        %v1205 = vpop.f32.mrb[0].mxu0
        %v1206 = vadd.f32 %v1078, %v1205
        %v1207 = vpop.f32.mrb[0].mxu0
        %v1208 = vpop.f32.mrb[0].mxu0
        %v1209 = vadd.f32 %v1078, %v1208
        %v1210 = vpop.f32.mrb[0].mxu0
        %1211 = vmatprep.mubr.bf16.mxu0 0
        %1212 = vmatmul.mubr.bf16.gmra.mrb[0].mxu0 %v1118
        %v1213 = vpop.f32.mrb[0].mxu0
        %v1214 = vadd.f32 %v1078, %v1213
        %v1215 = vpop.f32.mrb[0].mxu0
        %v1216 = vpop.f32.mrb[0].mxu0
        %v1217 = vadd.f32 %v1078, %v1216
        %v1218 = vpop.f32.mrb[0].mxu0
        %1219 = vdwg.mxu0
        %v1220 = vmax.f32 %v1158, 0.0
        %v1221 = vmax.f32 %v1161, 0.0
        %v1222 = vmax.f32 %v1166, 0.0
        %v1223 = vmax.f32 %v1169, 0.0
        %v1224 = vmax.f32 %v1174, 0.0
        %v1225 = vmax.f32 %v1177, 0.0
        %v1226 = vmax.f32 %v1182, 0.0
        %v1227 = vmax.f32 %v1185, 0.0
        %v1228 = vmax.f32 %v1190, 0.0
        %v1229 = vmax.f32 %v1193, 0.0
        %v1230 = vmax.f32 %v1198, 0.0
        %v1231 = vmax.f32 %v1201, 0.0
        %v1232 = vmax.f32 %v1206, 0.0
        %v1233 = vmax.f32 %v1209, 0.0
        %v1234 = vmax.f32 %v1214, 0.0
        %v1235 = vmax.f32 %v1217, 0.0
        %v1236 = vld [vmem:[%s9] sm:$0x1]
        %v1237 = vpack.c.bf16 %v1221, %v1220
        %v1238 = vpack.c.bf16 %v1223, %v1222
        %v1239 = vpack.c.bf16 %v1225, %v1224
        %v1240 = vpack.c.bf16 %v1227, %v1226
        %v1241 = vpack.c.bf16 %v1229, %v1228
        %v1242 = vpack.c.bf16 %v1231, %v1230
        %v1243 = vpack.c.bf16 %v1233, %v1232
        %v1244 = vpack.c.bf16 %v1235, %v1234
        %v1245 = vld [vmem:[#allocation2] sm:$0x1]
        %1247 = vset.pattern.permute.xlu0 0
        %1248 = vperm.xlu0 %1247, %v1245
        %v1249 = vpop.permute.xlu0 %1248
        %v1251 = vlaneseq
        %v1252 = vshrl.u32 %v1251, 7
        %v1253 = vsub.s32 0, %v1252
        %v1254 = vrot.slane %v1249, %v1253
        %vm1255 = vcmask 113664
        %v1257 = vsel %vm1255, %v1236, 0
        %v1260 = vsel %vm1255, %v1237, 0
        %v1263 = vsel %vm1255, %v1238, 0
        %v1266 = vsel %vm1255, %v1239, 0
        %v1269 = vsel %vm1255, %v1240, 0
        %v1272 = vsel %vm1255, %v1241, 0
        %v1275 = vsel %vm1255, %v1242, 0
        %v1278 = vsel %vm1255, %v1243, 0
        %v1281 = vsel %vm1255, %v1244, 0
        %1283 = vmatprep.subr.bf16.mxu0 0
        %1284 = vmatpush1.bf16.xpose.msra.mxu0 %v1260
        %1285 = vmatprep.subr.bf16.mxu0 0
        %1286 = vmatpush1.bf16.xpose.msra.mxu0 %v1263
        %1287 = vmatprep.subr.bf16.mxu0 0
        %1288 = vmatpush1.bf16.xpose.msra.mxu0 %v1266
        %1289 = vmatprep.subr.bf16.mxu0 0
        %1290 = vmatpush1.bf16.xpose.msra.mxu0 %v1269
        %1291 = vmatprep.subr.bf16.mxu0 0
        %1292 = vmatpush1.bf16.xpose.msra.mxu0 %v1272
        %1293 = vmatprep.subr.bf16.mxu0 0
        %1294 = vmatpush1.bf16.xpose.msra.mxu0 %v1275
        %1295 = vmatprep.subr.bf16.mxu0 0
        %1296 = vmatpush1.bf16.xpose.msra.mxu0 %v1278
        %1297 = vmatprep.subr.bf16.mxu0 0
        %1298 = vmatpush1.bf16.xpose.msra.mxu0 %v1281
        %1299 = vmatprep.subr.bf16.mxu0 0
        %1300 = vmatpush1.bf16.xpose.msra.mxu0 0
        %1301 = vmatprep.subr.bf16.mxu0 0
        %1302 = vmatpush1.bf16.xpose.msra.mxu0 0
        %1303 = vmatprep.subr.bf16.mxu0 0
        %1304 = vmatpush1.bf16.xpose.msra.mxu0 0
        %1305 = vmatprep.subr.bf16.mxu0 0
        %1306 = vmatpush1.bf16.xpose.msra.mxu0 0
        %1307 = vmatprep.subr.bf16.mxu0 0
        %1308 = vmatpush1.bf16.xpose.msra.mxu0 0
        %1309 = vmatprep.subr.bf16.mxu0 0
        %1310 = vmatpush1.bf16.xpose.msra.mxu0 0
        %1311 = vmatprep.subr.bf16.mxu0 0
        %1312 = vmatpush1.bf16.xpose.msra.mxu0 0
        %1313 = vmatprep.subr.bf16.mxu0 0
        %1314 = vmatpush1.bf16.xpose.msra.mxu0 0
        %1315 = vmatprep.mubr.bf16.mxu0 0
        %1316 = vmatmul.mubr.bf16.gmra.mrb[0].mxu0 %v1257
        %v1317 = vpop.f32.mrb[0].mxu0
        %v1318 = vadd.f32 %v1254, %v1317
        %v1319 = vpop.f32.mrb[0].mxu0
        %v1320 = vpop.f32.mrb[0].mxu0
        %v1321 = vpop.f32.mrb[0].mxu0
        %1322 = vdwg.mxu0
        %v1323 = vxor.u32 %v1318, 2147483648
        %v1324 = vmul.f32 %v1323, 1.442695
        %v1325 = vpow.pop %v1324
        %v1326 = vadd.f32 %v1325, 1.0
        %v1327 = vrcp.pop %v1326
        %v1328 = vmul.f32 1.0, %v1327
        %1329 = vst [vmem:[%s421] sm:$0x1] %v1328
        %s1330 = sand.u32 %s276, 1
        %s1331 = scalar_lea.sflag [#allocation4], %s1330
        %s1332 = sand.u32 %s276, 1
        %s1333 = scalar_lea.vmem [#allocation3], %s1332
        // Predicated region
        $region65: #{strokenet_forward.1} parent=63 // pred_check
          %p1334 = pneg %p286
        $region66: #{strokenet_forward.1} parent=63 // pred_check_branch
          %1336 = sbr.rel (%p1334) target = $region68
        $region67: #{strokenet_forward.1} parent=63 // pred_region
          %s1338 = ssub.s32 16, 16
          %1339 = vsyncadd %s1331, %s1338
          %s1340 = smul.addr %s27, 16
          %s1341 = scalar_lea.hbm %s11, %s1340
          %s1343 = sshll.u32 %s1333, 4
          %s1344 = int_to_ptr.vmem [resolvable:$true] %s1343
          %1346 = dma.vmem_to_hbm [thread:$0]  %s1344, 16, %s1341, %s1331
        $region68: #{strokenet_forward.1} parent=63 // pred_fallthru
          _
      $region64: #{strokenet_forward.1} parent=5 // pred_fallthru
        _
      %p1347 = scmp.le.s32.totalorder 2, %s22
      // Predicated region
      $region69: #{strokenet_forward.1} parent=5 // pred_check
        %p1348 = pneg %p1347
      $region70: #{strokenet_forward.1} parent=5 // pred_check_branch
        %1350 = sbr.rel (%p1348) target = $region72
      $region71: #{strokenet_forward.1} parent=5 // pred_region
        %s1351 = ssub.s32 %s22, 2
        // Predicated region
        $region73: #{strokenet_forward.1} parent=71 // pred_check
          %p1352 = pneg %p292
        $region74: #{strokenet_forward.1} parent=71 // pred_check_branch
          %1354 = sbr.rel (%p1352) target = $region76
        $region75: #{strokenet_forward.1} parent=71 // pred_region
          %s1355 = sand.u32 %s277, 1
          %s1356 = scalar_lea.sflag [#allocation4], %s1355
          %s1357 = sand.u32 %s277, 1
          %s1358 = scalar_lea.vmem [#allocation3], %s1357
          %1359 = dma.done %s1356, 16
        $region76: #{strokenet_forward.1} parent=71 // pred_fallthru
          _
      $region72: #{strokenet_forward.1} parent=5 // pred_fallthru
        _
    $region6: #{strokenet_forward.1} parent=1 // loop_footer
      %s26 = sadd.s32 1, %s22
    $region7: #{strokenet_forward.1} parent=1 // loop_footer_branch
      %21 = sbr.rel target = $region3
    $region8: #{strokenet_forward.1} parent=1 // loop_exit
      _
    %1360 = vsyncpa [#allocation4], 1
    %s1361 = scalar_lea.sflag [#allocation4], 1
    %1362 = vsyncpa %s1361, 1

</llo_original>
